<compile_context>
chip_gen: v5e
topology: v5e:2x2
jax: 0.10.0
libtpu: 0.0.40
codegen_flags: <defaults>
</compile_context>

<pallas_src>
import jax
import jax.numpy as jnp
import numpy as np
from jax.experimental import pallas as pl
from jax.experimental.pallas import tpu as pltpu


def _multi_embedding_kernel(idx_ref, tables_ref, out_ref):
    """Single invocation: all F features at once.

    idx_ref    : int32[F, B]        all indices (feature-major), VMEM
    tables_ref : float32[F, N, D]   all per-feature tables, zero-padded to N
    out_ref    : float32[B, F*D]    concatenated output (torch.cat(dim=1))
    """
    F, N, D = tables_ref.shape
    B = idx_ref.shape[1]

    # Hoist the (B, N) iota once; reused by every feature's one-hot compare.
    iota = jax.lax.broadcasted_iota(jnp.int32, (B, N), 1)

    embs = []
    for f in range(F):                                   # F static & tiny: unroll
        idx_f = idx_ref[f, :]                            # (B,) int32
        onehot = (iota == idx_f[:, None]).astype(tables_ref.dtype)   # (B, N)
        embs.append(jnp.dot(onehot, tables_ref[f],
                            preferred_element_type=jnp.float32))     # (B, D)

    # One lane-dense store of the whole concatenated result.
    out_ref[...] = jnp.concatenate(embs, axis=-1).astype(out_ref.dtype)


def multiple_embedding_forward(x, tables):
    """x: int[B, F]; tables: float32[F, N_max, D] -> float32[B, F*D]."""
    B, F = x.shape
    Ft, N, D = tables.shape
    assert Ft == F

    # Feature-major indices: tiny (F*B int32) transpose, keeps the in-kernel
    # index reads sublane-natural.  The *output* needs no transpose at all.
    idx_fm = jnp.transpose(x.astype(jnp.int32))          # (F, B)

    return pl.pallas_call(
        _multi_embedding_kernel,
        out_shape=jax.ShapeDtypeStruct((B, F * D), jnp.float32),
        grid_spec=pltpu.PrefetchScalarGridSpec(
            num_scalar_prefetch=0,
            grid=(1,),                                   # single step: no grid overhead
            in_specs=[
                pl.BlockSpec((F, B), lambda i: (0, 0)),          # all indices
                pl.BlockSpec((F, N, D), lambda i: (0, 0, 0)),    # all tables
            ],
            out_specs=pl.BlockSpec((B, F * D), lambda i: (0, 0)),
        ),
        compiler_params=pltpu.CompilerParams(
            dimension_semantics=("arbitrary",)),
    )(idx_fm, tables)


def init_tables(key, categorical_features, embedding_dim):
    """Deterministic nn.Embedding-style init (N(0,1)), zero-padded to N_max."""
    n_max = max(categorical_features)
    tables = []
    for i, n_cat in enumerate(categorical_features):
        k = jax.random.fold_in(key, i)
        t = jax.random.normal(k, (n_cat, embedding_dim), dtype=jnp.float32)
        t = jnp.pad(t, ((0, n_max - n_cat), (0, 0)))
        tables.append(t)
    return jnp.stack(tables, axis=0)                     # (F, N_max, D)


if __name__ == "__main__":
    categorical_features = [7, 13, 5, 11]
    embedding_dim = 8
    batch = 8

    key = jax.random.PRNGKey(0)
    k_tab, k_idx = jax.random.split(key)

    tables = init_tables(k_tab, categorical_features, embedding_dim)

    cols = [
        jax.random.randint(jax.random.fold_in(k_idx, i), (batch,), 0, n_cat,
                           dtype=jnp.int32)
        for i, n_cat in enumerate(categorical_features)
    ]
    x = jnp.stack(cols, axis=1)                          # (B, F) int32

    out = jax.block_until_ready(multiple_embedding_forward(x, tables))

    # Pure-JAX reference: per-feature take + concat along dim=1.
    ref = jnp.concatenate(
        [jnp.take(tables[i], x[:, i], axis=0)
         for i in range(len(categorical_features))], axis=1)

    assert out.shape == (batch, len(categorical_features) * embedding_dim)
    np.testing.assert_allclose(np.asarray(out), np.asarray(ref),
                               rtol=1e-6, atol=1e-6)
    print("KERNEL_OK")
</pallas_src>

<mosaic_0001>
module attributes {stable_mosaic.version = 11 : i64} {
  func.func @_multi_embedding_kernel(%arg0: i32, %arg1: memref<4x8xi32, #tpu.memory_space<vmem>>, %arg2: memref<4x13x8xf32, #tpu.memory_space<vmem>>, %arg3: memref<8x32xf32, #tpu.memory_space<vmem>>) attributes {dimension_semantics = [#tpu.dimension_semantics<arbitrary>], iteration_bounds = array<i64: 1>, scalar_prefetch = 0 : i64, scratch_operands = 0 : i64, tpu.core_type = #tpu.core_type<tc>, window_params = [{pipeline_mode = #tpu.pipeline_mode<synchronous>, transform_indices = @transform_0, window_bounds = array<i64: 4, 8>}, {pipeline_mode = #tpu.pipeline_mode<synchronous>, transform_indices = @transform_1, window_bounds = array<i64: 4, 13, 8>}, {pipeline_mode = #tpu.pipeline_mode<synchronous>, transform_indices = @transform_2, window_bounds = array<i64: 8, 32>}]} {
    %0 = tpu.iota {dimensions = array<i32: 1>} : vector<8x13xi32>
    %c0 = arith.constant 0 : index
    %c0_0 = arith.constant 0 : index
    %1 = vector.load %arg1[%c0, %c0_0] : memref<4x8xi32, #tpu.memory_space<vmem>>, vector<1x8xi32>
    %2 = vector.shape_cast %1 : vector<1x8xi32> to vector<8xi32>
    %3 = vector.shape_cast %2 : vector<8xi32> to vector<8x1xi32>
    %4 = vector.broadcast %3 : vector<8x1xi32> to vector<8x13xi32>
    %5 = arith.cmpi eq, %0, %4 : vector<8x13xi32>
    %6 = arith.extui %5 : vector<8x13xi1> to vector<8x13xi32>
    %7 = arith.sitofp %6 : vector<8x13xi32> to vector<8x13xf32>
    %c0_1 = arith.constant 0 : index
    %c0_2 = arith.constant 0 : index
    %c0_3 = arith.constant 0 : index
    %8 = vector.load %arg2[%c0_1, %c0_2, %c0_3] : memref<4x13x8xf32, #tpu.memory_space<vmem>>, vector<1x13x8xf32>
    %9 = vector.shape_cast %8 : vector<1x13x8xf32> to vector<13x8xf32>
    %cst = arith.constant dense<0.000000e+00> : vector<8x8xf32>
    %10 = tpu.matmul %7, %9, %cst {dimension_numbers = #tpu.dot_dimension_numbers<[1], [0], [0], [1], [0, 0, 1, 1], [], []>} : vector<8x13xf32>, vector<13x8xf32>, vector<8x8xf32> -> vector<8x8xf32>
    %c1 = arith.constant 1 : index
    %c0_4 = arith.constant 0 : index
    %11 = vector.load %arg1[%c1, %c0_4] : memref<4x8xi32, #tpu.memory_space<vmem>>, vector<1x8xi32>
    %12 = vector.shape_cast %11 : vector<1x8xi32> to vector<8xi32>
    %13 = vector.shape_cast %12 : vector<8xi32> to vector<8x1xi32>
    %14 = vector.broadcast %13 : vector<8x1xi32> to vector<8x13xi32>
    %15 = arith.cmpi eq, %0, %14 : vector<8x13xi32>
    %16 = arith.extui %15 : vector<8x13xi1> to vector<8x13xi32>
    %17 = arith.sitofp %16 : vector<8x13xi32> to vector<8x13xf32>
    %c1_5 = arith.constant 1 : index
    %c0_6 = arith.constant 0 : index
    %c0_7 = arith.constant 0 : index
    %18 = vector.load %arg2[%c1_5, %c0_6, %c0_7] : memref<4x13x8xf32, #tpu.memory_space<vmem>>, vector<1x13x8xf32>
    %19 = vector.shape_cast %18 : vector<1x13x8xf32> to vector<13x8xf32>
    %cst_8 = arith.constant dense<0.000000e+00> : vector<8x8xf32>
    %20 = tpu.matmul %17, %19, %cst_8 {dimension_numbers = #tpu.dot_dimension_numbers<[1], [0], [0], [1], [0, 0, 1, 1], [], []>} : vector<8x13xf32>, vector<13x8xf32>, vector<8x8xf32> -> vector<8x8xf32>
    %c2 = arith.constant 2 : index
    %c0_9 = arith.constant 0 : index
    %21 = vector.load %arg1[%c2, %c0_9] : memref<4x8xi32, #tpu.memory_space<vmem>>, vector<1x8xi32>
    %22 = vector.shape_cast %21 : vector<1x8xi32> to vector<8xi32>
    %23 = vector.shape_cast %22 : vector<8xi32> to vector<8x1xi32>
    %24 = vector.broadcast %23 : vector<8x1xi32> to vector<8x13xi32>
    %25 = arith.cmpi eq, %0, %24 : vector<8x13xi32>
    %26 = arith.extui %25 : vector<8x13xi1> to vector<8x13xi32>
    %27 = arith.sitofp %26 : vector<8x13xi32> to vector<8x13xf32>
    %c2_10 = arith.constant 2 : index
    %c0_11 = arith.constant 0 : index
    %c0_12 = arith.constant 0 : index
    %28 = vector.load %arg2[%c2_10, %c0_11, %c0_12] : memref<4x13x8xf32, #tpu.memory_space<vmem>>, vector<1x13x8xf32>
    %29 = vector.shape_cast %28 : vector<1x13x8xf32> to vector<13x8xf32>
    %cst_13 = arith.constant dense<0.000000e+00> : vector<8x8xf32>
    %30 = tpu.matmul %27, %29, %cst_13 {dimension_numbers = #tpu.dot_dimension_numbers<[1], [0], [0], [1], [0, 0, 1, 1], [], []>} : vector<8x13xf32>, vector<13x8xf32>, vector<8x8xf32> -> vector<8x8xf32>
    %c3 = arith.constant 3 : index
    %c0_14 = arith.constant 0 : index
    %31 = vector.load %arg1[%c3, %c0_14] : memref<4x8xi32, #tpu.memory_space<vmem>>, vector<1x8xi32>
    %32 = vector.shape_cast %31 : vector<1x8xi32> to vector<8xi32>
    %33 = vector.shape_cast %32 : vector<8xi32> to vector<8x1xi32>
    %34 = vector.broadcast %33 : vector<8x1xi32> to vector<8x13xi32>
    %35 = arith.cmpi eq, %0, %34 : vector<8x13xi32>
    %36 = arith.extui %35 : vector<8x13xi1> to vector<8x13xi32>
    %37 = arith.sitofp %36 : vector<8x13xi32> to vector<8x13xf32>
    %c3_15 = arith.constant 3 : index
    %c0_16 = arith.constant 0 : index
    %c0_17 = arith.constant 0 : index
    %38 = vector.load %arg2[%c3_15, %c0_16, %c0_17] : memref<4x13x8xf32, #tpu.memory_space<vmem>>, vector<1x13x8xf32>
    %39 = vector.shape_cast %38 : vector<1x13x8xf32> to vector<13x8xf32>
    %cst_18 = arith.constant dense<0.000000e+00> : vector<8x8xf32>
    %40 = tpu.matmul %37, %39, %cst_18 {dimension_numbers = #tpu.dot_dimension_numbers<[1], [0], [0], [1], [0, 0, 1, 1], [], []>} : vector<8x13xf32>, vector<13x8xf32>, vector<8x8xf32> -> vector<8x8xf32>
    %41 = tpu.concatenate %10, %20, %30, %40 in 1 : vector<8x8xf32>, vector<8x8xf32>, vector<8x8xf32>, vector<8x8xf32> -> vector<8x32xf32>
    %c0_19 = arith.constant 0 : index
    %c0_20 = arith.constant 0 : index
    %42 = vector.load %arg3[%c0_19, %c0_20] : memref<8x32xf32, #tpu.memory_space<vmem>>, vector<8x32xf32>
    tpu.vector_store %arg3[%c0_19, %c0_20], %41 {strides = array<i32>} : memref<8x32xf32, #tpu.memory_space<vmem>>, vector<8x32xf32>,
    return
  }
  func.func @transform_0(%arg0: i32) -> (i32, i32) {
    %c0_i32 = arith.constant 0 : i32
    %c0_i32_0 = arith.constant 0 : i32
    %c0_i32_1 = arith.constant 0 : i32
    return %c0_i32, %c0_i32_0 : i32, i32
  }
  func.func @transform_1(%arg0: i32) -> (i32, i32, i32) {
    %c0_i32 = arith.constant 0 : i32
    %c0_i32_0 = arith.constant 0 : i32
    %c0_i32_1 = arith.constant 0 : i32
    %c0_i32_2 = arith.constant 0 : i32
    return %c0_i32, %c0_i32_0, %c0_i32_1 : i32, i32, i32
  }
  func.func @transform_2(%arg0: i32) -> (i32, i32) {
    %c0_i32 = arith.constant 0 : i32
    %c0_i32_0 = arith.constant 0 : i32
    %c0_i32_1 = arith.constant 0 : i32
    return %c0_i32, %c0_i32_0 : i32, i32
  }
}

</mosaic_0001>

<llo_original>
// kernel: tpu_custom_call.1
$region0: #{tpu_custom_call.1}
  #allocation0 [shape = 'u32[]', space=smem, size = 0x4, offset = 0x4, fixed_abs, tag = 'smem constant byte address 0x4 - core index']
  #allocation1 [shape = 'u32[72,128]{1,0:T(1,128)}', space=vmem, size = 0x9000, scoped, tag = 'internal scratch']
  %s0 = inlined_call_operand.vmem [shape: s32[4,8], index: 0, kind: input, shape index: {}]
  %s1 = inlined_call_operand.vmem [shape: f32[4,13,8], index: 1, kind: input, shape index: {}]
  %s2 = inlined_call_operand.hbm [shape: f32[8,32], index: 2, kind: output, shape index: {}]
  %s3 = sld [smem:[#allocation0]]
  $region18: #{tpu_custom_call.1} parent=0
    _
  %s5 = ssub.s32 1, %s3
  %s6 = scalar_select 0, %s5, %s3
  $region1: #{tpu_custom_call.1} parent=0
    #allocation2 [shape = 'u8[4096]{0}', space=vmem, size = 0x1000, scoped, tag = 'output window, operand 0, single buffered']
    #allocation3 [shape = 's32[1]{0}', space=sflag, size = 0x4, scoped, tag = 'scoped memory for tpu_custom_call.1']
    %7 = vsyncpa [#allocation3], 0
    // Predicated region
    $region2: #{tpu_custom_call.1} parent=1 // pred_check
      _
    $region3: #{tpu_custom_call.1} parent=1 // pred_check_branch
      %9 = sbr.rel (0) target = $region5
    $region4: #{tpu_custom_call.1} parent=1 // pred_region
      _
    $region5: #{tpu_custom_call.1} parent=1 // pred_fallthru
      _
    // Predicated region
    $region6: #{tpu_custom_call.1} parent=1 // pred_check
      _
    $region7: #{tpu_custom_call.1} parent=1 // pred_check_branch
      %11 = sbr.rel (0) target = $region9
    $region8: #{tpu_custom_call.1} parent=1 // pred_region
      _
    $region9: #{tpu_custom_call.1} parent=1 // pred_fallthru
      _
    %v12 = vlaneseq
    %v13 = vand.u32 %v12, 127
    %v14 = vld [vmem:[%s0] sm:$0x1]
    %v15 = vperm.slane %v14, 0
    %v16 = vlaneseq
    %v17 = vshrl.u32 %v16, 7
    %19 = vset.pattern.permute.xlu0 %v17
    %20 = vperm.xlu0 %19, %v15
    %v21 = vpop.permute.xlu0 %20
    %vm22 = vcmp.eq.s32.totalorder %v13, %v21
    %v23 = vsel %vm22, 1, 0
    %v24 = vcvt.s32.f32 %v23
    %v25 = vld [vmem:[%s1] sm:$0xff]
    %v26 = vld [vmem:[%s1 + $0x8] sm:$0x1f]
    %vm27 = vcmask 105472
    %v29 = vsel %vm27, %v24, 0
    %vm31 = vcmask 1044480
    %v33 = vsel %vm31, %v26, 0
    %35 = vmatpush.msra.mxu0 0.0
    %36 = vmatpush.msra.mxu0 0.0
    %37 = vmatpush.msra.mxu0 0.0
    %38 = vmatpush.msra.mxu0 0.0
    %39 = vmatpush.msra.mxu0 0.0
    %40 = vmatpush.msra.mxu0 0.0
    %41 = vmatpush.msra.mxu0 0.0
    %42 = vmatpush.msra.mxu0 0.0
    %43 = vmatpush.msra.mxu0 0.0
    %44 = vmatpush.msra.mxu0 0.0
    %45 = vmatpush.msra.mxu0 0.0
    %46 = vmatpush.msra.mxu0 0.0
    %47 = vmatpush.msra.mxu0 0.0
    %48 = vmatpush.msra.mxu0 0.0
    %49 = vmatpush.msra.mxu0 %v33
    %50 = vmatpush.msra.mxu0 %v25
    %51 = vmatmul.f32.gmra.mxu0 %v29
    %v52 = vpop.f32.mrf.mxu0
    %v53 = vadd.f32 0.0, %v52
    %54 = vdwg.mxu0
    %v55 = vld [vmem:[%s0 + $0x1] sm:$0x1]
    %v56 = vperm.slane %v55, 0
    %v57 = vlaneseq
    %v58 = vshrl.u32 %v57, 7
    %60 = vset.pattern.permute.xlu0 %v58
    %61 = vperm.xlu0 %60, %v56
    %v62 = vpop.permute.xlu0 %61
    %vm63 = vcmp.eq.s32.totalorder %v13, %v62
    %v64 = vsel %vm63, 1, 0
    %v65 = vcvt.s32.f32 %v64
    %s66 = scalar_lea.vmem %s1, 16
    %v67 = vld [vmem:[%s66] sm:$0xff]
    %v68 = vld [vmem:[%s66 + $0x8] sm:$0x1f]
    %v70 = vsel %vm27, %v65, 0
    %v73 = vsel %vm31, %v68, 0
    %75 = vmatpush.msra.mxu0 0.0
    %76 = vmatpush.msra.mxu0 0.0
    %77 = vmatpush.msra.mxu0 0.0
    %78 = vmatpush.msra.mxu0 0.0
    %79 = vmatpush.msra.mxu0 0.0
    %80 = vmatpush.msra.mxu0 0.0
    %81 = vmatpush.msra.mxu0 0.0
    %82 = vmatpush.msra.mxu0 0.0
    %83 = vmatpush.msra.mxu0 0.0
    %84 = vmatpush.msra.mxu0 0.0
    %85 = vmatpush.msra.mxu0 0.0
    %86 = vmatpush.msra.mxu0 0.0
    %87 = vmatpush.msra.mxu0 0.0
    %88 = vmatpush.msra.mxu0 0.0
    %89 = vmatpush.msra.mxu0 %v73
    %90 = vmatpush.msra.mxu0 %v67
    %91 = vmatmul.f32.gmra.mxu0 %v70
    %v92 = vpop.f32.mrf.mxu0
    %v93 = vadd.f32 0.0, %v92
    %94 = vdwg.mxu0
    %v95 = vld [vmem:[%s0 + $0x2] sm:$0x1]
    %v96 = vperm.slane %v95, 0
    %v97 = vlaneseq
    %v98 = vshrl.u32 %v97, 7
    %100 = vset.pattern.permute.xlu0 %v98
    %101 = vperm.xlu0 %100, %v96
    %v102 = vpop.permute.xlu0 %101
    %vm103 = vcmp.eq.s32.totalorder %v13, %v102
    %v104 = vsel %vm103, 1, 0
    %v105 = vcvt.s32.f32 %v104
    %s106 = scalar_lea.vmem %s1, 32
    %v107 = vld [vmem:[%s106] sm:$0xff]
    %v108 = vld [vmem:[%s106 + $0x8] sm:$0x1f]
    %v110 = vsel %vm27, %v105, 0
    %v113 = vsel %vm31, %v108, 0
    %115 = vmatpush.msra.mxu0 0.0
    %116 = vmatpush.msra.mxu0 0.0
    %117 = vmatpush.msra.mxu0 0.0
    %118 = vmatpush.msra.mxu0 0.0
    %119 = vmatpush.msra.mxu0 0.0
    %120 = vmatpush.msra.mxu0 0.0
    %121 = vmatpush.msra.mxu0 0.0
    %122 = vmatpush.msra.mxu0 0.0
    %123 = vmatpush.msra.mxu0 0.0
    %124 = vmatpush.msra.mxu0 0.0
    %125 = vmatpush.msra.mxu0 0.0
    %126 = vmatpush.msra.mxu0 0.0
    %127 = vmatpush.msra.mxu0 0.0
    %128 = vmatpush.msra.mxu0 0.0
    %129 = vmatpush.msra.mxu0 %v113
    %130 = vmatpush.msra.mxu0 %v107
    %131 = vmatmul.f32.gmra.mxu0 %v110
    %v132 = vpop.f32.mrf.mxu0
    %v133 = vadd.f32 0.0, %v132
    %134 = vdwg.mxu0
    %v135 = vld [vmem:[%s0 + $0x3] sm:$0x1]
    %v136 = vperm.slane %v135, 0
    %v137 = vlaneseq
    %v138 = vshrl.u32 %v137, 7
    %140 = vset.pattern.permute.xlu0 %v138
    %141 = vperm.xlu0 %140, %v136
    %v142 = vpop.permute.xlu0 %141
    %vm143 = vcmp.eq.s32.totalorder %v13, %v142
    %v144 = vsel %vm143, 1, 0
    %v145 = vcvt.s32.f32 %v144
    %s146 = scalar_lea.vmem %s1, 48
    %v147 = vld [vmem:[%s146] sm:$0xff]
    %v148 = vld [vmem:[%s146 + $0x8] sm:$0x1f]
    %v150 = vsel %vm27, %v145, 0
    %v153 = vsel %vm31, %v148, 0
    %155 = vmatpush.msra.mxu0 0.0
    %156 = vmatpush.msra.mxu0 0.0
    %157 = vmatpush.msra.mxu0 0.0
    %158 = vmatpush.msra.mxu0 0.0
    %159 = vmatpush.msra.mxu0 0.0
    %160 = vmatpush.msra.mxu0 0.0
    %161 = vmatpush.msra.mxu0 0.0
    %162 = vmatpush.msra.mxu0 0.0
    %163 = vmatpush.msra.mxu0 0.0
    %164 = vmatpush.msra.mxu0 0.0
    %165 = vmatpush.msra.mxu0 0.0
    %166 = vmatpush.msra.mxu0 0.0
    %167 = vmatpush.msra.mxu0 0.0
    %168 = vmatpush.msra.mxu0 0.0
    %169 = vmatpush.msra.mxu0 %v153
    %170 = vmatpush.msra.mxu0 %v147
    %171 = vmatmul.f32.gmra.mxu0 %v150
    %v172 = vpop.f32.mrf.mxu0
    %v173 = vadd.f32 0.0, %v172
    %174 = vdwg.mxu0
    %176 = vrot.lane.b32.xlu0 %v93, 8
    %v177 = vpop.permute.xlu0 %176
    %180 = vrot.lane.b32.xlu0 %v133, 16
    %v181 = vpop.permute.xlu0 %180
    %184 = vrot.lane.b32.xlu0 %v173, 24
    %v185 = vpop.permute.xlu0 %184
    %vm187 = vcmask 64512
    %v188 = vsel %vm187, %v53, %v177
    %vm189 = vcmask 130048
    %v190 = vsel %vm189, %v188, %v181
    %vm191 = vcmask 195584
    %v192 = vsel %vm191, %v190, %v185
    %vm193 = vcmask 261120
    %194 = vst.msk [vmem:[#allocation2] sm:$0xff] %vm193, %v192
    // Predicated region
    $region10: #{tpu_custom_call.1} parent=1 // pred_check
      _
    $region11: #{tpu_custom_call.1} parent=1 // pred_check_branch
      %196 = sbr.rel (0) target = $region13
    $region12: #{tpu_custom_call.1} parent=1 // pred_region
      %198 = vsyncadd [#allocation3], 0
      %s200 = sshll.u32 [#allocation2], 4
      %s201 = int_to_ptr.vmem [resolvable:$true] %s200
      %s202 = sshll.u32 %s2, 4
      %s203 = int_to_ptr.hbm [resolvable:$true] %s202
      %205 = dma.vmem_to_hbm [thread:$0]  %s201, 128, %s203, [#allocation3]
    $region13: #{tpu_custom_call.1} parent=1 // pred_fallthru
      _
    // Predicated region
    $region14: #{tpu_custom_call.1} parent=1 // pred_check
      _
    $region15: #{tpu_custom_call.1} parent=1 // pred_check_branch
      %207 = sbr.rel (0) target = $region17
    $region16: #{tpu_custom_call.1} parent=1 // pred_region
      %209 = dma.done [#allocation3], 128
    $region17: #{tpu_custom_call.1} parent=1 // pred_fallthru
      _
    %210 = vsyncpa [#allocation3], 1

</llo_original>
